<compile_context>
chip_gen: v7x
topology: tpu7x:2x2x1
jax: 0.10.0
libtpu: 0.0.40
codegen_flags: <defaults>
</compile_context>

<pallas_src>
import functools

import jax
import jax.numpy as jnp
import numpy as np
from jax.experimental import pallas as pl
from jax.experimental.pallas import tpu as pltpu

EPS = 1e-5  # nn.InstanceNorm2d default eps, affine=False, biased variance

_TAPS = tuple((dy, dx) for dy in (-1, 0, 1) for dx in (-1, 0, 1))
_NC_TAPS = tuple(t for t in _TAPS if t != (0, 0))  # 8 non-centre taps, in _TAPS order


def _resnet_block_kernel(x_ref, w1s_ref, w2_ref, seg_ref, segt_ref, mask_ref, o_ref,
                         *, H, W, bn):
    """One grid step == `bn` batch samples, fully straight-line (no in-kernel loops).

    x_ref    : (Cin_p, bn*HW)    channel-first slab of bn flattened NCHW samples
    w1s_ref  : (2*Cout, 9*Cin_p) [conv1 ; shortcut-1x1 @ centre tap] im2col weights
    w2_ref   : (Cout, 9*Cout)    conv2 im2col weights
    seg_ref  : (bn*HW, bnp)      per-sample mean matrix (1/HW on own segment, else 0)
    segt_ref : (bnp, bn*HW)      0/1 broadcast-back matrix
    mask_ref : (8, bn*HW)        0/1 edge masks for the 8 non-centre taps
    o_ref    : (Cout, bn*HW)     channel-first output slab
    """
    HW = H * W
    L = bn * HW
    cout = o_ref.shape[0]

    w1s = w1s_ref[...]
    w2 = w2_ref[...]
    seg = seg_ref[...]
    segt = segt_ref[...]
    msk = mask_ref[...]

    def im2col(a):
        # a: (C, L). Tap block t holds a[c, y+dy, x+dx] (0 outside the sample's HxW),
        # built with XLU rolls across the concatenated lane axis + 0/1 edge masks.
        # Rolls that cross a sample boundary are exactly the positions the masks zero out.
        rows = []
        nc = 0
        for dy, dx in _TAPS:
            if (dy, dx) == (0, 0):
                rows.append(a)
            else:
                s = dy * W + dx
                v = pltpu.roll(a, shift=(-s) % L, axis=1)
                rows.append(v * msk[nc:nc + 1, :])
                nc += 1
        return jnp.concatenate(rows, axis=0)                       # (9*C, L)

    def inorm(z):
        # Per-row, per-sample InstanceNorm over each HW-lane segment, single pass:
        # sum/sumsq via one MXU matmul, var = E[z^2] - mean^2, broadcast back via MXU.
        c = z.shape[0]
        zz = jnp.concatenate([z, z * z], axis=0)                   # (2c, L)
        st = jnp.dot(zz, seg, preferred_element_type=jnp.float32)  # (2c, bnp): mean, E[z^2]
        mean, ez2 = st[:c], st[c:]
        inv = jax.lax.rsqrt(jnp.maximum(ez2 - mean * mean, 0.0) + EPS)
        sb = jnp.dot(jnp.concatenate([inv, -mean * inv], axis=0), segt,
                     preferred_element_type=jnp.float32)           # (2c, L): scale, shift
        return z * sb[:c] + sb[c:]

    # conv1 (3x3) + fused 1x1 shortcut: one wide, lane-dense MXU matmul for all bn samples.
    y1 = jnp.dot(w1s, im2col(x_ref[...]), preferred_element_type=jnp.float32)  # (2*Cout, L)
    y1n = inorm(y1)                      # IN over conv1 rows AND shortcut rows together
    h1 = jnp.maximum(y1n[:cout], 0.0)    # conv1 -> IN -> relu
    sc = y1n[cout:]                      # shortcut 1x1 -> IN

    y2 = inorm(jnp.dot(w2, im2col(h1), preferred_element_type=jnp.float32))    # conv2 -> IN
    o_ref[...] = jnp.maximum(y2 + sc, 0.0).astype(o_ref.dtype)


def _pick_samples_per_step(N, HW):
    # Amortize per-step pipeline overhead (target a few-thousand-lane slab per step) while
    # keeping >= 2 grid steps so the 'parallel' batch axis uses both TensorCores on v7x.
    cap = max(1, min(16, 8192 // max(HW, 1)))
    divs = [d for d in range(1, N + 1) if N % d == 0]
    good = [d for d in divs if d <= cap and N // d >= 2]
    if good:
        return max(good)
    ok = [d for d in divs if d <= cap]
    return max(ok) if ok else 1


def resnet_block(x_nchw, w1_oihw, w2_oihw, ws_oihw, *, samples_per_step=None):
    """x_nchw: (N, Cin, H, W); weights in PyTorch OIHW layout. Returns (N, Cout, H, W)."""
    N, cin, H, W = x_nchw.shape
    cout = w1_oihw.shape[0]
    HW = H * W
    assert cout % 8 == 0, "Cout must be a multiple of 8 (sublane tile)"
    assert HW % 128 == 0, "H*W must be a multiple of 128 (lane-dense layout)"
    # TODO(synk): lane-pad HW (and mask stores) for H*W not a multiple of 128.

    bn = samples_per_step if samples_per_step is not None else _pick_samples_per_step(N, HW)
    assert N % bn == 0
    L = bn * HW
    bnp = ((bn + 7) // 8) * 8                 # segment count padded to a sublane multiple
    cin_p = ((cin + 7) // 8) * 8

    # Channel-first activation slab (Cin_p, N*HW): single wrapper-side relayout pass
    # (transpose + conditional pad/cast fuse into one XLA copy).
    x_cf = jnp.transpose(x_nchw.reshape(N, cin, HW), (1, 0, 2)).reshape(cin, N * HW)
    if x_cf.dtype != jnp.float32:
        x_cf = x_cf.astype(jnp.float32)
    if cin_p != cin:
        x_cf = jnp.pad(x_cf, ((0, cin_p - cin), (0, 0)))

    # Weight prep hoisted out of the kernel (grid-invariant, VMEM-resident).
    # w1s rows [0,Cout): conv1 as (Cout, 9*Cin_p), column order (ky*3+kx)*Cin_p + ci.
    # w1s rows [Cout,2*Cout): shortcut 1x1 placed at the centre-tap (t=4) columns.
    w1m = jnp.transpose(w1_oihw, (0, 2, 3, 1))                      # (Cout,3,3,Cin)
    w1m = jnp.pad(w1m, ((0, 0), (0, 0), (0, 0), (0, cin_p - cin)))
    w1m = w1m.reshape(cout, 9 * cin_p).astype(jnp.float32)
    ws = ws_oihw.reshape(cout, cin).astype(jnp.float32)
    ws_ext = jnp.zeros((cout, 9 * cin_p), jnp.float32)
    ws_ext = ws_ext.at[:, 4 * cin_p:4 * cin_p + cin].set(ws)
    w1s = jnp.concatenate([w1m, ws_ext], axis=0)                    # (2*Cout, 9*Cin_p)
    w2m = jnp.transpose(w2_oihw, (0, 2, 3, 1)).reshape(cout, 9 * cout).astype(jnp.float32)

    # Grid-invariant helper matrices: segmented-InstanceNorm matrices + halo edge masks.
    sidx = jnp.arange(L, dtype=jnp.int32) // HW                     # sample id per lane
    seg = (sidx[:, None] == jnp.arange(bnp)[None, :]).astype(jnp.float32) / HW   # (L, bnp)
    segt = (jnp.arange(bnp)[:, None] == sidx[None, :]).astype(jnp.float32)       # (bnp, L)
    q = jnp.arange(L, dtype=jnp.int32) % HW
    xx, yy = q % W, q // W
    mrows = []
    for dy, dx in _NC_TAPS:
        m = jnp.ones((L,), bool)
        if dx == -1:
            m = m & (xx >= 1)
        if dx == 1:
            m = m & (xx <= W - 2)
        if dy == -1:
            m = m & (yy >= 1)
        if dy == 1:
            m = m & (yy <= H - 2)
        mrows.append(m)
    masks = jnp.stack(mrows).astype(jnp.float32)                    # (8, L)

    flops = (2 * N * HW * (2 * cout * 9 * cin_p + cout * 9 * cout)  # convs
             + 2 * N * HW * bnp * 12 * cout)                        # segmented-IN matmuls
    bytes_accessed = 4 * (cin_p * N * HW + cout * N * HW
                          + int(w1s.size) + int(w2m.size)
                          + int(seg.size) + int(segt.size) + int(masks.size))
    cost = pl.CostEstimate(flops=int(flops), transcendentals=3 * N * cout,
                           bytes_accessed=int(bytes_accessed))

    grid_spec = pltpu.PrefetchScalarGridSpec(
        num_scalar_prefetch=0,
        grid=(N // bn,),
        in_specs=[
            pl.BlockSpec((cin_p, L), lambda n: (0, n)),
            pl.BlockSpec((2 * cout, 9 * cin_p), lambda n: (0, 0)),
            pl.BlockSpec((cout, 9 * cout), lambda n: (0, 0)),
            pl.BlockSpec((L, bnp), lambda n: (0, 0)),
            pl.BlockSpec((bnp, L), lambda n: (0, 0)),
            pl.BlockSpec((8, L), lambda n: (0, 0)),
        ],
        out_specs=pl.BlockSpec((cout, L), lambda n: (0, n)),
    )

    out = pl.pallas_call(
        functools.partial(_resnet_block_kernel, H=H, W=W, bn=bn),
        out_shape=jax.ShapeDtypeStruct((cout, N * HW), x_nchw.dtype),
        grid_spec=grid_spec,
        compiler_params=pltpu.CompilerParams(
            dimension_semantics=("parallel",),
            vmem_limit_bytes=32 * 1024 * 1024),
        cost_estimate=cost,
    )(x_cf, w1s, w2m, seg, segt, masks)

    return jnp.transpose(out.reshape(cout, N, HW), (1, 0, 2)).reshape(N, cout, H, W)


def resnet_block_ref(x_nchw, w1_oihw, w2_oihw, ws_oihw):
    """Pure-JAX reference (matches PyTorch ResnetBlock forward, stride=1, NCHW)."""
    def conv(x, w):
        return jax.lax.conv_general_dilated(
            x, w, window_strides=(1, 1), padding="SAME",
            dimension_numbers=("NCHW", "OIHW", "NCHW"))

    def inorm(y):
        m = jnp.mean(y, axis=(2, 3), keepdims=True)
        v = jnp.mean((y - m) ** 2, axis=(2, 3), keepdims=True)
        return (y - m) / jnp.sqrt(v + EPS)

    h = jax.nn.relu(inorm(conv(x_nchw, w1_oihw)))
    out = inorm(conv(h, w2_oihw))
    sc = inorm(conv(x_nchw, ws_oihw))
    return jax.nn.relu(out + sc)


if __name__ == "__main__":
    N, H, W = 2, 16, 16
    CIN, COUT = 4, 8   # in_features != out_features -> shortcut conv path exercised

    key = jax.random.PRNGKey(0)
    kx, k1, k2, k3 = jax.random.split(key, 4)

    # PyTorch-native NCHW input and OIHW weights.
    x = jax.random.normal(kx, (N, CIN, H, W), dtype=jnp.float32)
    w1 = 0.1 * jax.random.normal(k1, (COUT, CIN, 3, 3), dtype=jnp.float32)   # conv1 weight
    w2 = 0.1 * jax.random.normal(k2, (COUT, COUT, 3, 3), dtype=jnp.float32)  # conv2 weight
    ws = 0.1 * jax.random.normal(k3, (COUT, CIN, 1, 1), dtype=jnp.float32)   # shortcut 1x1

    out = jax.block_until_ready(resnet_block(x, w1, w2, ws))
    ref = jax.block_until_ready(resnet_block_ref(x, w1, w2, ws))

    np.testing.assert_allclose(np.asarray(out), np.asarray(ref), rtol=1e-4, atol=1e-4)
    print("KERNEL_OK")
</pallas_src>

<mosaic_0001>
module attributes {stable_mosaic.version = 11 : i64} {
  func.func @_resnet_block_kernel(%arg0: i32, %arg1: memref<8x256xf32, #tpu.memory_space<vmem>>, %arg2: memref<16x72xf32, #tpu.memory_space<vmem>>, %arg3: memref<8x72xf32, #tpu.memory_space<vmem>>, %arg4: memref<256x8xf32, #tpu.memory_space<vmem>>, %arg5: memref<8x256xf32, #tpu.memory_space<vmem>>, %arg6: memref<8x256xf32, #tpu.memory_space<vmem>>, %arg7: memref<8x256xf32, #tpu.memory_space<vmem>>) attributes {dimension_semantics = [#tpu.dimension_semantics<parallel>], iteration_bounds = array<i64: 2>, scalar_prefetch = 0 : i64, scratch_operands = 0 : i64, tpu.core_type = #tpu.core_type<tc>, window_params = [{transform_indices = @transform_0, window_bounds = array<i64: 8, 256>}, {pipeline_mode = #tpu.pipeline_mode<synchronous>, transform_indices = @transform_1, window_bounds = array<i64: 16, 72>}, {pipeline_mode = #tpu.pipeline_mode<synchronous>, transform_indices = @transform_2, window_bounds = array<i64: 8, 72>}, {pipeline_mode = #tpu.pipeline_mode<synchronous>, transform_indices = @transform_3, window_bounds = array<i64: 256, 8>}, {pipeline_mode = #tpu.pipeline_mode<synchronous>, transform_indices = @transform_4, window_bounds = array<i64: 8, 256>}, {pipeline_mode = #tpu.pipeline_mode<synchronous>, transform_indices = @transform_5, window_bounds = array<i64: 8, 256>}, {transform_indices = @transform_6, window_bounds = array<i64: 8, 256>}]} {
    %c0 = arith.constant 0 : index
    %c0_0 = arith.constant 0 : index
    %0 = vector.load %arg2[%c0, %c0_0] : memref<16x72xf32, #tpu.memory_space<vmem>>, vector<16x72xf32>
    %c0_1 = arith.constant 0 : index
    %c0_2 = arith.constant 0 : index
    %1 = vector.load %arg3[%c0_1, %c0_2] : memref<8x72xf32, #tpu.memory_space<vmem>>, vector<8x72xf32>
    %c0_3 = arith.constant 0 : index
    %c0_4 = arith.constant 0 : index
    %2 = vector.load %arg4[%c0_3, %c0_4] : memref<256x8xf32, #tpu.memory_space<vmem>>, vector<256x8xf32>
    %c0_5 = arith.constant 0 : index
    %c0_6 = arith.constant 0 : index
    %3 = vector.load %arg5[%c0_5, %c0_6] : memref<8x256xf32, #tpu.memory_space<vmem>>, vector<8x256xf32>
    %c0_7 = arith.constant 0 : index
    %c0_8 = arith.constant 0 : index
    %4 = vector.load %arg6[%c0_7, %c0_8] : memref<8x256xf32, #tpu.memory_space<vmem>>, vector<8x256xf32>
    %c0_9 = arith.constant 0 : index
    %c0_10 = arith.constant 0 : index
    %5 = vector.load %arg1[%c0_9, %c0_10] : memref<8x256xf32, #tpu.memory_space<vmem>>, vector<8x256xf32>
    %c17_i32 = arith.constant 17 : i32
    %6 = tpu.dynamic_rotate %5 by %c17_i32 dim 1 : vector<8x256xf32>, i32 -> vector<8x256xf32>
    %7 = vector.extract_strided_slice %4 {offsets = [0, 0], sizes = [1, 256], strides = [1, 1]} : vector<8x256xf32> to vector<1x256xf32>
    %8 = vector.broadcast %7 : vector<1x256xf32> to vector<8x256xf32>
    %9 = arith.mulf %6, %8 : vector<8x256xf32>
    %c16_i32 = arith.constant 16 : i32
    %10 = tpu.dynamic_rotate %5 by %c16_i32 dim 1 : vector<8x256xf32>, i32 -> vector<8x256xf32>
    %11 = vector.extract_strided_slice %4 {offsets = [1, 0], sizes = [1, 256], strides = [1, 1]} : vector<8x256xf32> to vector<1x256xf32>
    %12 = vector.broadcast %11 : vector<1x256xf32> to vector<8x256xf32>
    %13 = arith.mulf %10, %12 : vector<8x256xf32>
    %c15_i32 = arith.constant 15 : i32
    %14 = tpu.dynamic_rotate %5 by %c15_i32 dim 1 : vector<8x256xf32>, i32 -> vector<8x256xf32>
    %15 = vector.extract_strided_slice %4 {offsets = [2, 0], sizes = [1, 256], strides = [1, 1]} : vector<8x256xf32> to vector<1x256xf32>
    %16 = vector.broadcast %15 : vector<1x256xf32> to vector<8x256xf32>
    %17 = arith.mulf %14, %16 : vector<8x256xf32>
    %c1_i32 = arith.constant 1 : i32
    %18 = tpu.dynamic_rotate %5 by %c1_i32 dim 1 : vector<8x256xf32>, i32 -> vector<8x256xf32>
    %19 = vector.extract_strided_slice %4 {offsets = [3, 0], sizes = [1, 256], strides = [1, 1]} : vector<8x256xf32> to vector<1x256xf32>
    %20 = vector.broadcast %19 : vector<1x256xf32> to vector<8x256xf32>
    %21 = arith.mulf %18, %20 : vector<8x256xf32>
    %c255_i32 = arith.constant 255 : i32
    %22 = tpu.dynamic_rotate %5 by %c255_i32 dim 1 : vector<8x256xf32>, i32 -> vector<8x256xf32>
    %23 = vector.extract_strided_slice %4 {offsets = [4, 0], sizes = [1, 256], strides = [1, 1]} : vector<8x256xf32> to vector<1x256xf32>
    %24 = vector.broadcast %23 : vector<1x256xf32> to vector<8x256xf32>
    %25 = arith.mulf %22, %24 : vector<8x256xf32>
    %c241_i32 = arith.constant 241 : i32
    %26 = tpu.dynamic_rotate %5 by %c241_i32 dim 1 : vector<8x256xf32>, i32 -> vector<8x256xf32>
    %27 = vector.extract_strided_slice %4 {offsets = [5, 0], sizes = [1, 256], strides = [1, 1]} : vector<8x256xf32> to vector<1x256xf32>
    %28 = vector.broadcast %27 : vector<1x256xf32> to vector<8x256xf32>
    %29 = arith.mulf %26, %28 : vector<8x256xf32>
    %c240_i32 = arith.constant 240 : i32
    %30 = tpu.dynamic_rotate %5 by %c240_i32 dim 1 : vector<8x256xf32>, i32 -> vector<8x256xf32>
    %31 = vector.extract_strided_slice %4 {offsets = [6, 0], sizes = [1, 256], strides = [1, 1]} : vector<8x256xf32> to vector<1x256xf32>
    %32 = vector.broadcast %31 : vector<1x256xf32> to vector<8x256xf32>
    %33 = arith.mulf %30, %32 : vector<8x256xf32>
    %c239_i32 = arith.constant 239 : i32
    %34 = tpu.dynamic_rotate %5 by %c239_i32 dim 1 : vector<8x256xf32>, i32 -> vector<8x256xf32>
    %35 = vector.extract_strided_slice %4 {offsets = [7, 0], sizes = [1, 256], strides = [1, 1]} : vector<8x256xf32> to vector<1x256xf32>
    %36 = vector.broadcast %35 : vector<1x256xf32> to vector<8x256xf32>
    %37 = arith.mulf %34, %36 : vector<8x256xf32>
    %38 = tpu.concatenate %9, %13, %17, %21, %5, %25, %29, %33, %37 in 0 : vector<8x256xf32>, vector<8x256xf32>, vector<8x256xf32>, vector<8x256xf32>, vector<8x256xf32>, vector<8x256xf32>, vector<8x256xf32>, vector<8x256xf32>, vector<8x256xf32> -> vector<72x256xf32>
    %cst = arith.constant dense<0.000000e+00> : vector<16x256xf32>
    %39 = tpu.matmul %0, %38, %cst {dimension_numbers = #tpu.dot_dimension_numbers<[1], [0], [0], [1], [0, 0, 1, 1], [], []>} : vector<16x72xf32>, vector<72x256xf32>, vector<16x256xf32> -> vector<16x256xf32>
    %40 = arith.mulf %39, %39 : vector<16x256xf32>
    %41 = tpu.concatenate %39, %40 in 0 : vector<16x256xf32>, vector<16x256xf32> -> vector<32x256xf32>
    %cst_11 = arith.constant dense<0.000000e+00> : vector<32x8xf32>
    %42 = tpu.matmul %41, %2, %cst_11 {dimension_numbers = #tpu.dot_dimension_numbers<[1], [0], [0], [1], [0, 0, 1, 1], [], []>} : vector<32x256xf32>, vector<256x8xf32>, vector<32x8xf32> -> vector<32x8xf32>
    %43 = vector.extract_strided_slice %42 {offsets = [0, 0], sizes = [16, 8], strides = [1, 1]} : vector<32x8xf32> to vector<16x8xf32>
    %44 = vector.extract_strided_slice %42 {offsets = [16, 0], sizes = [16, 8], strides = [1, 1]} : vector<32x8xf32> to vector<16x8xf32>
    %45 = arith.mulf %43, %43 : vector<16x8xf32>
    %46 = arith.subf %44, %45 : vector<16x8xf32>
    %cst_12 = arith.constant 0.000000e+00 : f32
    %47 = vector.broadcast %cst_12 : f32 to vector<16x8xf32>
    %48 = arith.maximumf %46, %47 : vector<16x8xf32>
    %cst_13 = arith.constant 9.99999974E-6 : f32
    %49 = vector.broadcast %cst_13 : f32 to vector<16x8xf32>
    %50 = arith.addf %48, %49 : vector<16x8xf32>
    %51 = math.rsqrt %50 : vector<16x8xf32>
    %cst_14 = arith.constant 0.000000e+00 : f32
    %52 = vector.broadcast %cst_14 : f32 to vector<16x8xf32>
    %53 = arith.subf %52, %43 : vector<16x8xf32>
    %54 = arith.mulf %53, %51 : vector<16x8xf32>
    %55 = tpu.concatenate %51, %54 in 0 : vector<16x8xf32>, vector<16x8xf32> -> vector<32x8xf32>
    %cst_15 = arith.constant dense<0.000000e+00> : vector<32x256xf32>
    %56 = tpu.matmul %55, %3, %cst_15 {dimension_numbers = #tpu.dot_dimension_numbers<[1], [0], [0], [1], [0, 0, 1, 1], [], []>} : vector<32x8xf32>, vector<8x256xf32>, vector<32x256xf32> -> vector<32x256xf32>
    %57 = vector.extract_strided_slice %56 {offsets = [0, 0], sizes = [16, 256], strides = [1, 1]} : vector<32x256xf32> to vector<16x256xf32>
    %58 = arith.mulf %39, %57 : vector<16x256xf32>
    %59 = vector.extract_strided_slice %56 {offsets = [16, 0], sizes = [16, 256], strides = [1, 1]} : vector<32x256xf32> to vector<16x256xf32>
    %60 = arith.addf %58, %59 : vector<16x256xf32>
    %61 = vector.extract_strided_slice %60 {offsets = [0, 0], sizes = [8, 256], strides = [1, 1]} : vector<16x256xf32> to vector<8x256xf32>
    %cst_16 = arith.constant 0.000000e+00 : f32
    %62 = vector.broadcast %cst_16 : f32 to vector<8x256xf32>
    %63 = arith.maximumf %61, %62 : vector<8x256xf32>
    %64 = vector.extract_strided_slice %60 {offsets = [8, 0], sizes = [8, 256], strides = [1, 1]} : vector<16x256xf32> to vector<8x256xf32>
    %c17_i32_17 = arith.constant 17 : i32
    %65 = tpu.dynamic_rotate %63 by %c17_i32_17 dim 1 : vector<8x256xf32>, i32 -> vector<8x256xf32>
    %66 = vector.extract_strided_slice %4 {offsets = [0, 0], sizes = [1, 256], strides = [1, 1]} : vector<8x256xf32> to vector<1x256xf32>
    %67 = vector.broadcast %66 : vector<1x256xf32> to vector<8x256xf32>
    %68 = arith.mulf %65, %67 : vector<8x256xf32>
    %c16_i32_18 = arith.constant 16 : i32
    %69 = tpu.dynamic_rotate %63 by %c16_i32_18 dim 1 : vector<8x256xf32>, i32 -> vector<8x256xf32>
    %70 = vector.extract_strided_slice %4 {offsets = [1, 0], sizes = [1, 256], strides = [1, 1]} : vector<8x256xf32> to vector<1x256xf32>
    %71 = vector.broadcast %70 : vector<1x256xf32> to vector<8x256xf32>
    %72 = arith.mulf %69, %71 : vector<8x256xf32>
    %c15_i32_19 = arith.constant 15 : i32
    %73 = tpu.dynamic_rotate %63 by %c15_i32_19 dim 1 : vector<8x256xf32>, i32 -> vector<8x256xf32>
    %74 = vector.extract_strided_slice %4 {offsets = [2, 0], sizes = [1, 256], strides = [1, 1]} : vector<8x256xf32> to vector<1x256xf32>
    %75 = vector.broadcast %74 : vector<1x256xf32> to vector<8x256xf32>
    %76 = arith.mulf %73, %75 : vector<8x256xf32>
    %c1_i32_20 = arith.constant 1 : i32
    %77 = tpu.dynamic_rotate %63 by %c1_i32_20 dim 1 : vector<8x256xf32>, i32 -> vector<8x256xf32>
    %78 = vector.extract_strided_slice %4 {offsets = [3, 0], sizes = [1, 256], strides = [1, 1]} : vector<8x256xf32> to vector<1x256xf32>
    %79 = vector.broadcast %78 : vector<1x256xf32> to vector<8x256xf32>
    %80 = arith.mulf %77, %79 : vector<8x256xf32>
    %c255_i32_21 = arith.constant 255 : i32
    %81 = tpu.dynamic_rotate %63 by %c255_i32_21 dim 1 : vector<8x256xf32>, i32 -> vector<8x256xf32>
    %82 = vector.extract_strided_slice %4 {offsets = [4, 0], sizes = [1, 256], strides = [1, 1]} : vector<8x256xf32> to vector<1x256xf32>
    %83 = vector.broadcast %82 : vector<1x256xf32> to vector<8x256xf32>
    %84 = arith.mulf %81, %83 : vector<8x256xf32>
    %c241_i32_22 = arith.constant 241 : i32
    %85 = tpu.dynamic_rotate %63 by %c241_i32_22 dim 1 : vector<8x256xf32>, i32 -> vector<8x256xf32>
    %86 = vector.extract_strided_slice %4 {offsets = [5, 0], sizes = [1, 256], strides = [1, 1]} : vector<8x256xf32> to vector<1x256xf32>
    %87 = vector.broadcast %86 : vector<1x256xf32> to vector<8x256xf32>
    %88 = arith.mulf %85, %87 : vector<8x256xf32>
    %c240_i32_23 = arith.constant 240 : i32
    %89 = tpu.dynamic_rotate %63 by %c240_i32_23 dim 1 : vector<8x256xf32>, i32 -> vector<8x256xf32>
    %90 = vector.extract_strided_slice %4 {offsets = [6, 0], sizes = [1, 256], strides = [1, 1]} : vector<8x256xf32> to vector<1x256xf32>
    %91 = vector.broadcast %90 : vector<1x256xf32> to vector<8x256xf32>
    %92 = arith.mulf %89, %91 : vector<8x256xf32>
    %c239_i32_24 = arith.constant 239 : i32
    %93 = tpu.dynamic_rotate %63 by %c239_i32_24 dim 1 : vector<8x256xf32>, i32 -> vector<8x256xf32>
    %94 = vector.extract_strided_slice %4 {offsets = [7, 0], sizes = [1, 256], strides = [1, 1]} : vector<8x256xf32> to vector<1x256xf32>
    %95 = vector.broadcast %94 : vector<1x256xf32> to vector<8x256xf32>
    %96 = arith.mulf %93, %95 : vector<8x256xf32>
    %97 = tpu.concatenate %68, %72, %76, %80, %63, %84, %88, %92, %96 in 0 : vector<8x256xf32>, vector<8x256xf32>, vector<8x256xf32>, vector<8x256xf32>, vector<8x256xf32>, vector<8x256xf32>, vector<8x256xf32>, vector<8x256xf32>, vector<8x256xf32> -> vector<72x256xf32>
    %cst_25 = arith.constant dense<0.000000e+00> : vector<8x256xf32>
    %98 = tpu.matmul %1, %97, %cst_25 {dimension_numbers = #tpu.dot_dimension_numbers<[1], [0], [0], [1], [0, 0, 1, 1], [], []>} : vector<8x72xf32>, vector<72x256xf32>, vector<8x256xf32> -> vector<8x256xf32>
    %99 = arith.mulf %98, %98 : vector<8x256xf32>
    %100 = tpu.concatenate %98, %99 in 0 : vector<8x256xf32>, vector<8x256xf32> -> vector<16x256xf32>
    %cst_26 = arith.constant dense<0.000000e+00> : vector<16x8xf32>
    %101 = tpu.matmul %100, %2, %cst_26 {dimension_numbers = #tpu.dot_dimension_numbers<[1], [0], [0], [1], [0, 0, 1, 1], [], []>} : vector<16x256xf32>, vector<256x8xf32>, vector<16x8xf32> -> vector<16x8xf32>
    %102 = vector.extract_strided_slice %101 {offsets = [0, 0], sizes = [8, 8], strides = [1, 1]} : vector<16x8xf32> to vector<8x8xf32>
    %103 = vector.extract_strided_slice %101 {offsets = [8, 0], sizes = [8, 8], strides = [1, 1]} : vector<16x8xf32> to vector<8x8xf32>
    %104 = arith.mulf %102, %102 : vector<8x8xf32>
    %105 = arith.subf %103, %104 : vector<8x8xf32>
    %cst_27 = arith.constant 0.000000e+00 : f32
    %106 = vector.broadcast %cst_27 : f32 to vector<8x8xf32>
    %107 = arith.maximumf %105, %106 : vector<8x8xf32>
    %cst_28 = arith.constant 9.99999974E-6 : f32
    %108 = vector.broadcast %cst_28 : f32 to vector<8x8xf32>
    %109 = arith.addf %107, %108 : vector<8x8xf32>
    %110 = math.rsqrt %109 : vector<8x8xf32>
    %cst_29 = arith.constant 0.000000e+00 : f32
    %111 = vector.broadcast %cst_29 : f32 to vector<8x8xf32>
    %112 = arith.subf %111, %102 : vector<8x8xf32>
    %113 = arith.mulf %112, %110 : vector<8x8xf32>
    %114 = tpu.concatenate %110, %113 in 0 : vector<8x8xf32>, vector<8x8xf32> -> vector<16x8xf32>
    %cst_30 = arith.constant dense<0.000000e+00> : vector<16x256xf32>
    %115 = tpu.matmul %114, %3, %cst_30 {dimension_numbers = #tpu.dot_dimension_numbers<[1], [0], [0], [1], [0, 0, 1, 1], [], []>} : vector<16x8xf32>, vector<8x256xf32>, vector<16x256xf32> -> vector<16x256xf32>
    %116 = vector.extract_strided_slice %115 {offsets = [0, 0], sizes = [8, 256], strides = [1, 1]} : vector<16x256xf32> to vector<8x256xf32>
    %117 = arith.mulf %98, %116 : vector<8x256xf32>
    %118 = vector.extract_strided_slice %115 {offsets = [8, 0], sizes = [8, 256], strides = [1, 1]} : vector<16x256xf32> to vector<8x256xf32>
    %119 = arith.addf %117, %118 : vector<8x256xf32>
    %120 = arith.addf %119, %64 : vector<8x256xf32>
    %cst_31 = arith.constant 0.000000e+00 : f32
    %121 = vector.broadcast %cst_31 : f32 to vector<8x256xf32>
    %122 = arith.maximumf %120, %121 : vector<8x256xf32>
    %c0_32 = arith.constant 0 : index
    %c0_33 = arith.constant 0 : index
    %123 = vector.load %arg7[%c0_32, %c0_33] : memref<8x256xf32, #tpu.memory_space<vmem>>, vector<8x256xf32>
    tpu.vector_store %arg7[%c0_32, %c0_33], %122 {strides = array<i32>} : memref<8x256xf32, #tpu.memory_space<vmem>>, vector<8x256xf32>,
    return
  }
  func.func @transform_0(%arg0: i32) -> (i32, i32) {
    %c0_i32 = arith.constant 0 : i32
    %c0_i32_0 = arith.constant 0 : i32
    return %c0_i32, %arg0 : i32, i32
  }
  func.func @transform_1(%arg0: i32) -> (i32, i32) {
    %c0_i32 = arith.constant 0 : i32
    %c0_i32_0 = arith.constant 0 : i32
    %c0_i32_1 = arith.constant 0 : i32
    return %c0_i32, %c0_i32_0 : i32, i32
  }
  func.func @transform_2(%arg0: i32) -> (i32, i32) {
    %c0_i32 = arith.constant 0 : i32
    %c0_i32_0 = arith.constant 0 : i32
    %c0_i32_1 = arith.constant 0 : i32
    return %c0_i32, %c0_i32_0 : i32, i32
  }
  func.func @transform_3(%arg0: i32) -> (i32, i32) {
    %c0_i32 = arith.constant 0 : i32
    %c0_i32_0 = arith.constant 0 : i32
    %c0_i32_1 = arith.constant 0 : i32
    return %c0_i32, %c0_i32_0 : i32, i32
  }
  func.func @transform_4(%arg0: i32) -> (i32, i32) {
    %c0_i32 = arith.constant 0 : i32
    %c0_i32_0 = arith.constant 0 : i32
    %c0_i32_1 = arith.constant 0 : i32
    return %c0_i32, %c0_i32_0 : i32, i32
  }
  func.func @transform_5(%arg0: i32) -> (i32, i32) {
    %c0_i32 = arith.constant 0 : i32
    %c0_i32_0 = arith.constant 0 : i32
    %c0_i32_1 = arith.constant 0 : i32
    return %c0_i32, %c0_i32_0 : i32, i32
  }
  func.func @transform_6(%arg0: i32) -> (i32, i32) {
    %c0_i32 = arith.constant 0 : i32
    %c0_i32_0 = arith.constant 0 : i32
    return %c0_i32, %arg0 : i32, i32
  }
}

</mosaic_0001>

<llo_original>
// kernel: tpu_custom_call.1
$region0: #{tpu_custom_call.1}
  #allocation0 [shape = 'u32[]', space=smem, size = 0x4, offset = 0x4, fixed_abs, tag = 'smem constant byte address 0x4 - core index']
  #allocation1 [shape = 'u32[144,128]{1,0:T(1,128)}', space=vmem, size = 0x12000, scoped, tag = 'internal scratch']
  %s0 = inlined_call_operand.vmem [shape: f32[8,512], index: 0, kind: input, shape index: {}]
  %s1 = inlined_call_operand.vmem [shape: f32[16,72], index: 1, kind: input, shape index: {}]
  %s2 = inlined_call_operand.vmem [shape: f32[8,72], index: 2, kind: input, shape index: {}]
  %s3 = inlined_call_operand.vmem [shape: f32[256,8], index: 3, kind: input, shape index: {}]
  %s4 = inlined_call_operand.vmem [shape: f32[8,256], index: 4, kind: input, shape index: {}]
  %s5 = inlined_call_operand.vmem [shape: f32[8,256], index: 5, kind: input, shape index: {}]
  %s6 = inlined_call_operand.hbm [shape: f32[8,512], index: 6, kind: output, shape index: {}]
  %s7 = sld [smem:[#allocation0]]
  $region57: #{tpu_custom_call.1} parent=0
    _
  %s9 = ssub.s32 1, %s7
  %s10 = scalar_select 0, %s9, %s7
  $region1: #{tpu_custom_call.1} parent=0
    #allocation2 [shape = 'u8[16384]{0}', space=vmem, size = 0x4000, scoped, tag = 'output window, operand 0']
    #allocation3 [shape = 's32[2]{0}', space=sflag, size = 0x8, scoped, tag = 'scoped memory for tpu_custom_call.1']
    %11 = vsyncpa [#allocation3], 0
    %s12 = scalar_lea.sflag [#allocation3], 1
    %13 = vsyncpa %s12, 0
    loop: start=0, step=1, limit=4
    $region2: #{tpu_custom_call.1} parent=1 // loop_pre_header
      _
    $region3: #{tpu_custom_call.1} parent=1 // loop_header
      %s15 = sphi 0, %s19
      %p16 = scmp.ge.s32.totalorder %s15, 4
      %s25 = sphi 0, %s27
      %s28 = sphi 0, %s25
      %s29 = sphi 0, %s28
      %s45 = sphi 0, %s29
      %s49 = sphi 0, %s49
      %s51 = sphi 0, %s49
      %s52 = sphi 0, %s51
      %s66 = sphi 0, %s52
      %s70 = sphi 0, %s70
      %s72 = sphi 0, %s70
      %s73 = sphi 0, %s72
      %s87 = sphi 0, %s73
      %s91 = sphi 0, %s91
      %s93 = sphi 0, %s91
      %s94 = sphi 0, %s93
      %s108 = sphi 0, %s94
      %s112 = sphi 0, %s112
      %s114 = sphi 0, %s112
      %s115 = sphi 0, %s114
      %s129 = sphi 0, %s115
      %s133 = sphi 0, %s133
      %s135 = sphi 0, %s133
      %s136 = sphi 0, %s135
      %s150 = sphi 0, %s136
      %s156 = sphi 0, %s158
      %s159 = sphi 0, %s156
      %s160 = sphi 0, %s159
      %s176 = sphi 0, %s160
    $region4: #{tpu_custom_call.1} parent=1 // loop_header_branch
      %18 = sbr.rel (%p16) target = $region8
    $region5: #{tpu_custom_call.1} parent=1 // loop_body
      %s20 = ssub.s32 %s15, 1
      %s21 = ssub.s32 %s15, 2
      %s22 = sadd.s32 %s15, 1
      %s23 = ssub.s32 %s15, %s22
      %p24 = scmp.eq.s32.totalorder %s23, 0
      %s26 = sadd.s32 %s25, 1
      %s27 = scalar_select %p24, %s25, %s26
      %p30 = pneg %p24
      %p31 = scmp.eq.s32.totalorder %s15, 1
      %p32 = por %p30, %p31
      %p33 = scmp.ne.s32.totalorder %s25, %s28
      %p34 = scmp.eq.s32.totalorder %s15, 0
      %p35 = por %p33, %p34
      %p36 = scmp.ne.s32.totalorder %s25, %s28
      %p37 = scmp.eq.s32.totalorder %s20, 1
      %p38 = por %p36, %p37
      %p39 = scmp.ne.s32.totalorder %s28, %s29
      %p40 = scmp.eq.s32.totalorder %s20, 0
      %p41 = por %p39, %p40
      %p42 = scmp.ne.s32.totalorder %s28, %s29
      %p43 = scmp.eq.s32.totalorder %s21, 1
      %p44 = por %p42, %p43
      %p46 = scmp.ne.s32.totalorder %s29, %s45
      %p47 = scmp.eq.s32.totalorder %s21, 0
      %p48 = por %p46, %p47
      %s50 = sadd.s32 %s49, 1
      %p53 = scmp.eq.s32.totalorder %s15, 1
      %p54 = scmp.ne.s32.totalorder %s49, %s51
      %p55 = scmp.eq.s32.totalorder %s15, 0
      %p56 = por %p54, %p55
      %p57 = scmp.ne.s32.totalorder %s49, %s51
      %p58 = scmp.eq.s32.totalorder %s20, 1
      %p59 = por %p57, %p58
      %p60 = scmp.ne.s32.totalorder %s51, %s52
      %p61 = scmp.eq.s32.totalorder %s20, 0
      %p62 = por %p60, %p61
      %p63 = scmp.ne.s32.totalorder %s51, %s52
      %p64 = scmp.eq.s32.totalorder %s21, 1
      %p65 = por %p63, %p64
      %p67 = scmp.ne.s32.totalorder %s52, %s66
      %p68 = scmp.eq.s32.totalorder %s21, 0
      %p69 = por %p67, %p68
      %s71 = sadd.s32 %s70, 1
      %p74 = scmp.eq.s32.totalorder %s15, 1
      %p75 = scmp.ne.s32.totalorder %s70, %s72
      %p76 = scmp.eq.s32.totalorder %s15, 0
      %p77 = por %p75, %p76
      %p78 = scmp.ne.s32.totalorder %s70, %s72
      %p79 = scmp.eq.s32.totalorder %s20, 1
      %p80 = por %p78, %p79
      %p81 = scmp.ne.s32.totalorder %s72, %s73
      %p82 = scmp.eq.s32.totalorder %s20, 0
      %p83 = por %p81, %p82
      %p84 = scmp.ne.s32.totalorder %s72, %s73
      %p85 = scmp.eq.s32.totalorder %s21, 1
      %p86 = por %p84, %p85
      %p88 = scmp.ne.s32.totalorder %s73, %s87
      %p89 = scmp.eq.s32.totalorder %s21, 0
      %p90 = por %p88, %p89
      %s92 = sadd.s32 %s91, 1
      %p95 = scmp.eq.s32.totalorder %s15, 1
      %p96 = scmp.ne.s32.totalorder %s91, %s93
      %p97 = scmp.eq.s32.totalorder %s15, 0
      %p98 = por %p96, %p97
      %p99 = scmp.ne.s32.totalorder %s91, %s93
      %p100 = scmp.eq.s32.totalorder %s20, 1
      %p101 = por %p99, %p100
      %p102 = scmp.ne.s32.totalorder %s93, %s94
      %p103 = scmp.eq.s32.totalorder %s20, 0
      %p104 = por %p102, %p103
      %p105 = scmp.ne.s32.totalorder %s93, %s94
      %p106 = scmp.eq.s32.totalorder %s21, 1
      %p107 = por %p105, %p106
      %p109 = scmp.ne.s32.totalorder %s94, %s108
      %p110 = scmp.eq.s32.totalorder %s21, 0
      %p111 = por %p109, %p110
      %s113 = sadd.s32 %s112, 1
      %p116 = scmp.eq.s32.totalorder %s15, 1
      %p117 = scmp.ne.s32.totalorder %s112, %s114
      %p118 = scmp.eq.s32.totalorder %s15, 0
      %p119 = por %p117, %p118
      %p120 = scmp.ne.s32.totalorder %s112, %s114
      %p121 = scmp.eq.s32.totalorder %s20, 1
      %p122 = por %p120, %p121
      %p123 = scmp.ne.s32.totalorder %s114, %s115
      %p124 = scmp.eq.s32.totalorder %s20, 0
      %p125 = por %p123, %p124
      %p126 = scmp.ne.s32.totalorder %s114, %s115
      %p127 = scmp.eq.s32.totalorder %s21, 1
      %p128 = por %p126, %p127
      %p130 = scmp.ne.s32.totalorder %s115, %s129
      %p131 = scmp.eq.s32.totalorder %s21, 0
      %p132 = por %p130, %p131
      %s134 = sadd.s32 %s133, 1
      %p137 = scmp.eq.s32.totalorder %s15, 1
      %p138 = scmp.ne.s32.totalorder %s133, %s135
      %p139 = scmp.eq.s32.totalorder %s15, 0
      %p140 = por %p138, %p139
      %p141 = scmp.ne.s32.totalorder %s133, %s135
      %p142 = scmp.eq.s32.totalorder %s20, 1
      %p143 = por %p141, %p142
      %p144 = scmp.ne.s32.totalorder %s135, %s136
      %p145 = scmp.eq.s32.totalorder %s20, 0
      %p146 = por %p144, %p145
      %p147 = scmp.ne.s32.totalorder %s135, %s136
      %p148 = scmp.eq.s32.totalorder %s21, 1
      %p149 = por %p147, %p148
      %p151 = scmp.ne.s32.totalorder %s136, %s150
      %p152 = scmp.eq.s32.totalorder %s21, 0
      %p153 = por %p151, %p152
      %s154 = ssub.s32 %s15, %s22
      %p155 = scmp.eq.s32.totalorder %s154, 0
      %s157 = sadd.s32 %s156, 1
      %s158 = scalar_select %p155, %s156, %s157
      %p161 = pneg %p155
      %p162 = scmp.eq.s32.totalorder %s15, 1
      %p163 = por %p161, %p162
      %p164 = scmp.ne.s32.totalorder %s156, %s159
      %p165 = scmp.eq.s32.totalorder %s15, 0
      %p166 = por %p164, %p165
      %p167 = scmp.ne.s32.totalorder %s156, %s159
      %p168 = scmp.eq.s32.totalorder %s20, 1
      %p169 = por %p167, %p168
      %p170 = scmp.ne.s32.totalorder %s159, %s160
      %p171 = scmp.eq.s32.totalorder %s20, 0
      %p172 = por %p170, %p171
      %p173 = scmp.ne.s32.totalorder %s159, %s160
      %p174 = scmp.eq.s32.totalorder %s21, 1
      %p175 = por %p173, %p174
      %p177 = scmp.ne.s32.totalorder %s160, %s176
      %p178 = scmp.eq.s32.totalorder %s21, 0
      %p179 = por %p177, %p178
      %p180 = scmp.le.s32.totalorder 1, %s15
      %p181 = scmp.lt.s32.totalorder %s15, 3
      %p182 = pnand %p180, %p181
      %p183 = pneg %p182
      // Predicated region
      $region9: #{tpu_custom_call.1} parent=5 // pred_check
        _
      $region10: #{tpu_custom_call.1} parent=5 // pred_check_branch
        %185 = sbr.rel (%p182) target = $region12
      $region11: #{tpu_custom_call.1} parent=5 // pred_region
        %s186 = ssub.s32 %s15, 1
        // Predicated region
        $region13: #{tpu_custom_call.1} parent=11 // pred_check
          %p187 = pneg %p62
        $region14: #{tpu_custom_call.1} parent=11 // pred_check_branch
          %189 = sbr.rel (%p187) target = $region16
        $region15: #{tpu_custom_call.1} parent=11 // pred_region
          _
        $region16: #{tpu_custom_call.1} parent=11 // pred_fallthru
          _
        // Predicated region
        $region17: #{tpu_custom_call.1} parent=11 // pred_check
          %p190 = pneg %p83
        $region18: #{tpu_custom_call.1} parent=11 // pred_check_branch
          %192 = sbr.rel (%p190) target = $region20
        $region19: #{tpu_custom_call.1} parent=11 // pred_region
          _
        $region20: #{tpu_custom_call.1} parent=11 // pred_fallthru
          _
        // Predicated region
        $region21: #{tpu_custom_call.1} parent=11 // pred_check
          %p193 = pneg %p104
        $region22: #{tpu_custom_call.1} parent=11 // pred_check_branch
          %195 = sbr.rel (%p193) target = $region24
        $region23: #{tpu_custom_call.1} parent=11 // pred_region
          _
        $region24: #{tpu_custom_call.1} parent=11 // pred_fallthru
          _
        // Predicated region
        $region25: #{tpu_custom_call.1} parent=11 // pred_check
          %p196 = pneg %p125
        $region26: #{tpu_custom_call.1} parent=11 // pred_check_branch
          %198 = sbr.rel (%p196) target = $region28
        $region27: #{tpu_custom_call.1} parent=11 // pred_region
          _
        $region28: #{tpu_custom_call.1} parent=11 // pred_fallthru
          _
        // Predicated region
        $region29: #{tpu_custom_call.1} parent=11 // pred_check
          %p199 = pneg %p146
        $region30: #{tpu_custom_call.1} parent=11 // pred_check_branch
          %201 = sbr.rel (%p199) target = $region32
        $region31: #{tpu_custom_call.1} parent=11 // pred_region
          _
        $region32: #{tpu_custom_call.1} parent=11 // pred_fallthru
          _
      $region12: #{tpu_custom_call.1} parent=5 // pred_fallthru
        _
      %p202 = scmp.lt.s32.totalorder %s15, 2
      // Predicated region
      $region33: #{tpu_custom_call.1} parent=5 // pred_check
        %p203 = pneg %p202
      $region34: #{tpu_custom_call.1} parent=5 // pred_check_branch
        %205 = sbr.rel (%p203) target = $region36
      $region35: #{tpu_custom_call.1} parent=5 // pred_region
        // Predicated region
        $region37: #{tpu_custom_call.1} parent=35 // pred_check
          %p206 = pneg %p35
        $region38: #{tpu_custom_call.1} parent=35 // pred_check_branch
          %208 = sbr.rel (%p206) target = $region40
        $region39: #{tpu_custom_call.1} parent=35 // pred_region
          %s209 = smul.u32 2, %s15
          %p210 = scmp.lt.s32.totalorder %s209, 3
          %s211 = scalar_select %p210, %s209, 3
          %s212 = smul.addr %s211, 8
          %s213 = scalar_lea.vmem %s0, %s212
          %s214 = smul.u32 2, %s15
        $region40: #{tpu_custom_call.1} parent=35 // pred_fallthru
          _
      $region36: #{tpu_custom_call.1} parent=5 // pred_fallthru
        _
      %p215 = scmp.le.s32.totalorder 1, %s15
      %p216 = scmp.lt.s32.totalorder %s15, 3
      %p217 = pnand %p215, %p216
      %p218 = pneg %p217
      // Predicated region
      $region41: #{tpu_custom_call.1} parent=5 // pred_check
        _
      $region42: #{tpu_custom_call.1} parent=5 // pred_check_branch
        %220 = sbr.rel (%p217) target = $region44
      $region43: #{tpu_custom_call.1} parent=5 // pred_region
        %s221 = ssub.s32 %s15, 1
        %s222 = smul.u32 2, %s20
        %p223 = scmp.lt.s32.totalorder %s222, 3
        %s224 = scalar_select %p223, %s222, 3
        %s225 = smul.addr %s224, 8
        %s226 = scalar_lea.vmem %s0, %s225
        %p227 = pneg %p41
        %p228 = pneg %p38
        %p229 = pneg %p62
        %p230 = pneg %p59
        %p231 = pneg %p83
        %p232 = pneg %p80
        %p233 = pneg %p104
        %p234 = pneg %p101
        %p235 = pneg %p125
        %p236 = pneg %p122
        %p237 = pneg %p146
        %p238 = pneg %p143
        %p239 = pneg %p172
        %p240 = pneg %p169
        %s241 = sand.u32 %s159, 1
        %s242 = scalar_lea.sflag [#allocation3], %s241
        %s243 = sand.u32 %s159, 1
        %s244 = smul.addr %s243, 16
        %s245 = scalar_lea.vmem [#allocation2], %s244
        %s246 = smul.u32 2, %s20
        %p247 = scmp.lt.s32.totalorder %s246, 3
        %s248 = scalar_select %p247, %s246, 3
        %s249 = smul.addr %s248, 8
        %s250 = scalar_lea.vmem %s0, %s249
        %s251 = smul.u32 2, %s20
        %s252 = smul.u32 2, %s20
        %v253 = vld [vmem:[%s1] sm:$0xff]
        %v254 = vld [vmem:[%s1 + $0x8] sm:$0xff]
        %v255 = vld [vmem:[%s2] sm:$0xff]
        %v256 = vld [vmem:[%s3] sm:$0xff]
        %v257 = vld [vmem:[%s3 + $0x8] sm:$0xff]
        %v258 = vld [vmem:[%s3 + $0x10] sm:$0xff]
        %v259 = vld [vmem:[%s3 + $0x18] sm:$0xff]
        %v260 = vld [vmem:[%s3 + $0x20] sm:$0xff]
        %v261 = vld [vmem:[%s3 + $0x28] sm:$0xff]
        %v262 = vld [vmem:[%s3 + $0x30] sm:$0xff]
        %v263 = vld [vmem:[%s3 + $0x38] sm:$0xff]
        %v264 = vld [vmem:[%s3 + $0x40] sm:$0xff]
        %v265 = vld [vmem:[%s3 + $0x48] sm:$0xff]
        %v266 = vld [vmem:[%s3 + $0x50] sm:$0xff]
        %v267 = vld [vmem:[%s3 + $0x58] sm:$0xff]
        %v268 = vld [vmem:[%s3 + $0x60] sm:$0xff]
        %v269 = vld [vmem:[%s3 + $0x68] sm:$0xff]
        %v270 = vld [vmem:[%s3 + $0x70] sm:$0xff]
        %v271 = vld [vmem:[%s3 + $0x78] sm:$0xff]
        %v272 = vld [vmem:[%s3 + $0x80] sm:$0xff]
        %v273 = vld [vmem:[%s3 + $0x88] sm:$0xff]
        %v274 = vld [vmem:[%s3 + $0x90] sm:$0xff]
        %v275 = vld [vmem:[%s3 + $0x98] sm:$0xff]
        %v276 = vld [vmem:[%s3 + $0xa0] sm:$0xff]
        %v277 = vld [vmem:[%s3 + $0xa8] sm:$0xff]
        %v278 = vld [vmem:[%s3 + $0xb0] sm:$0xff]
        %v279 = vld [vmem:[%s3 + $0xb8] sm:$0xff]
        %v280 = vld [vmem:[%s3 + $0xc0] sm:$0xff]
        %v281 = vld [vmem:[%s3 + $0xc8] sm:$0xff]
        %v282 = vld [vmem:[%s3 + $0xd0] sm:$0xff]
        %v283 = vld [vmem:[%s3 + $0xd8] sm:$0xff]
        %v284 = vld [vmem:[%s3 + $0xe0] sm:$0xff]
        %v285 = vld [vmem:[%s3 + $0xe8] sm:$0xff]
        %v286 = vld [vmem:[%s3 + $0xf0] sm:$0xff]
        %v287 = vld [vmem:[%s3 + $0xf8] sm:$0xff]
        %v288 = vld [vmem:[%s4] sm:$0xff]
        %v289 = vld [vmem:[%s4 + $0x8] sm:$0xff]
        %v290 = vld [vmem:[%s5] sm:$0xff]
        %v291 = vld [vmem:[%s5 + $0x8] sm:$0xff]
        %v292 = vld [vmem:[%s250] sm:$0xff]
        %v293 = vld [vmem:[%s250 + $0x8] sm:$0xff]
        %294 = vrot.lane.b32.xlu0 %v292, 17
        %v295 = vpop.permute.xlu0 %294
        %296 = vrot.lane.b32.xlu0 %v293, 17
        %v297 = vpop.permute.xlu0 %296
        %v298 = vlaneseq
        %v299 = vand.u32 %v298, 127
        %vm300 = vcmp.lt.s32.totalorder %v299, 17
        %v301 = vsel %vm300, %v295, %v297
        %v302 = vsel %vm300, %v297, %v295
        %v303 = vlaneseq
        %v304 = vshrl.u32 %v303, 7
        %v305 = vsub.s32 0, %v304
        %v306 = vrot.slane %v290, %v305
        %v307 = vlaneseq
        %v308 = vshrl.u32 %v307, 7
        %v309 = vsub.s32 0, %v308
        %v310 = vrot.slane %v291, %v309
        %v311 = vmul.f32 %v302, %v306
        %v312 = vmul.f32 %v301, %v310
        %313 = vrot.lane.b32.xlu0 %v292, 16
        %v314 = vpop.permute.xlu0 %313
        %315 = vrot.lane.b32.xlu0 %v293, 16
        %v316 = vpop.permute.xlu0 %315
        %vm317 = vcmp.lt.s32.totalorder %v299, 16
        %v318 = vsel %vm317, %v314, %v316
        %v319 = vsel %vm317, %v316, %v314
        %v320 = vlaneseq
        %v321 = vshrl.u32 %v320, 7
        %v322 = vsub.s32 1, %v321
        %v323 = vrot.slane %v290, %v322
        %v324 = vlaneseq
        %v325 = vshrl.u32 %v324, 7
        %v326 = vsub.s32 1, %v325
        %v327 = vrot.slane %v291, %v326
        %v328 = vmul.f32 %v319, %v323
        %v329 = vmul.f32 %v318, %v327
        %330 = vrot.lane.b32.xlu0 %v292, 15
        %v331 = vpop.permute.xlu0 %330
        %332 = vrot.lane.b32.xlu0 %v293, 15
        %v333 = vpop.permute.xlu0 %332
        %vm334 = vcmp.lt.s32.totalorder %v299, 15
        %v335 = vsel %vm334, %v331, %v333
        %v336 = vsel %vm334, %v333, %v331
        %v337 = vlaneseq
        %v338 = vshrl.u32 %v337, 7
        %v339 = vsub.s32 2, %v338
        %v340 = vrot.slane %v290, %v339
        %v341 = vlaneseq
        %v342 = vshrl.u32 %v341, 7
        %v343 = vsub.s32 2, %v342
        %v344 = vrot.slane %v291, %v343
        %v345 = vmul.f32 %v336, %v340
        %v346 = vmul.f32 %v335, %v344
        %347 = vrot.lane.b32.xlu0 %v292, 1
        %v348 = vpop.permute.xlu0 %347
        %349 = vrot.lane.b32.xlu0 %v293, 1
        %v350 = vpop.permute.xlu0 %349
        %vm351 = vcmp.lt.s32.totalorder %v299, 1
        %v352 = vsel %vm351, %v348, %v350
        %v353 = vsel %vm351, %v350, %v348
        %v354 = vlaneseq
        %v355 = vshrl.u32 %v354, 7
        %v356 = vsub.s32 3, %v355
        %v357 = vrot.slane %v290, %v356
        %v358 = vlaneseq
        %v359 = vshrl.u32 %v358, 7
        %v360 = vsub.s32 3, %v359
        %v361 = vrot.slane %v291, %v360
        %v362 = vmul.f32 %v353, %v357
        %v363 = vmul.f32 %v352, %v361
        %364 = vrot.lane.b32.xlu0 %v292, 127
        %v365 = vpop.permute.xlu0 %364
        %366 = vrot.lane.b32.xlu0 %v293, 127
        %v367 = vpop.permute.xlu0 %366
        %vm368 = vcmp.lt.s32.totalorder %v299, 127
        %v369 = vsel %vm368, %v365, %v367
        %v370 = vsel %vm368, %v367, %v365
        %v371 = vlaneseq
        %v372 = vshrl.u32 %v371, 7
        %v373 = vsub.s32 4, %v372
        %v374 = vrot.slane %v290, %v373
        %v375 = vlaneseq
        %v376 = vshrl.u32 %v375, 7
        %v377 = vsub.s32 4, %v376
        %v378 = vrot.slane %v291, %v377
        %v379 = vmul.f32 %v369, %v374
        %v380 = vmul.f32 %v370, %v378
        %381 = vrot.lane.b32.xlu0 %v292, 113
        %v382 = vpop.permute.xlu0 %381
        %383 = vrot.lane.b32.xlu0 %v293, 113
        %v384 = vpop.permute.xlu0 %383
        %vm385 = vcmp.lt.s32.totalorder %v299, 113
        %v386 = vsel %vm385, %v382, %v384
        %v387 = vsel %vm385, %v384, %v382
        %v388 = vlaneseq
        %v389 = vshrl.u32 %v388, 7
        %v390 = vsub.s32 5, %v389
        %v391 = vrot.slane %v290, %v390
        %v392 = vlaneseq
        %v393 = vshrl.u32 %v392, 7
        %v394 = vsub.s32 5, %v393
        %v395 = vrot.slane %v291, %v394
        %v396 = vmul.f32 %v386, %v391
        %v397 = vmul.f32 %v387, %v395
        %398 = vrot.lane.b32.xlu0 %v292, 112
        %v399 = vpop.permute.xlu0 %398
        %400 = vrot.lane.b32.xlu0 %v293, 112
        %v401 = vpop.permute.xlu0 %400
        %vm402 = vcmp.lt.s32.totalorder %v299, 112
        %v403 = vsel %vm402, %v399, %v401
        %v404 = vsel %vm402, %v401, %v399
        %v405 = vlaneseq
        %v406 = vshrl.u32 %v405, 7
        %v407 = vsub.s32 6, %v406
        %v408 = vrot.slane %v290, %v407
        %v409 = vlaneseq
        %v410 = vshrl.u32 %v409, 7
        %v411 = vsub.s32 6, %v410
        %v412 = vrot.slane %v291, %v411
        %v413 = vmul.f32 %v403, %v408
        %v414 = vmul.f32 %v404, %v412
        %415 = vrot.lane.b32.xlu0 %v292, 111
        %v416 = vpop.permute.xlu0 %415
        %417 = vrot.lane.b32.xlu0 %v293, 111
        %v418 = vpop.permute.xlu0 %417
        %vm419 = vcmp.lt.s32.totalorder %v299, 111
        %v420 = vsel %vm419, %v416, %v418
        %v421 = vsel %vm419, %v418, %v416
        %v422 = vlaneseq
        %v423 = vshrl.u32 %v422, 7
        %v424 = vsub.s32 7, %v423
        %v425 = vrot.slane %v290, %v424
        %v426 = vlaneseq
        %v427 = vshrl.u32 %v426, 7
        %v428 = vsub.s32 7, %v427
        %v429 = vrot.slane %v291, %v428
        %v430 = vmul.f32 %v420, %v425
        %v431 = vmul.f32 %v421, %v429
        %vm432 = vcmask 588800
        %v434 = vsel %vm432, %v253, 0
        %v437 = vsel %vm432, %v254, 0
        %439 = vmatprep.subr.mxu0 %v312
        %440 = vmatpush1.msra.mxu0 %v311
        %441 = vmatprep.subr.mxu0 %v329
        %442 = vmatpush1.msra.mxu0 %v328
        %443 = vmatprep.subr.mxu0 %v346
        %444 = vmatpush1.msra.mxu0 %v345
        %445 = vmatprep.subr.mxu0 %v363
        %446 = vmatpush1.msra.mxu0 %v362
        %447 = vmatprep.subr.mxu0 %v293
        %448 = vmatpush1.msra.mxu0 %v292
        %449 = vmatprep.subr.mxu0 %v380
        %450 = vmatpush1.msra.mxu0 %v379
        %451 = vmatprep.subr.mxu0 %v397
        %452 = vmatpush1.msra.mxu0 %v396
        %453 = vmatprep.subr.mxu0 %v414
        %454 = vmatpush1.msra.mxu0 %v413
        %455 = vmatprep.subr.mxu0 %v431
        %456 = vmatpush1.msra.mxu0 %v430
        %457 = vmatprep.subr.mxu0 0.0
        %458 = vmatpush1.msra.mxu0 0.0
        %459 = vmatprep.subr.mxu0 0.0
        %460 = vmatpush1.msra.mxu0 0.0
        %461 = vmatprep.subr.mxu0 0.0
        %462 = vmatpush1.msra.mxu0 0.0
        %463 = vmatprep.subr.mxu0 0.0
        %464 = vmatpush1.msra.mxu0 0.0
        %465 = vmatprep.subr.mxu0 0.0
        %466 = vmatpush1.msra.mxu0 0.0
        %467 = vmatprep.subr.mxu0 0.0
        %468 = vmatpush1.msra.mxu0 0.0
        %469 = vmatprep.subr.mxu0 0.0
        %470 = vmatpush1.msra.mxu0 0.0
        %471 = vmatprep.subr.mxu0 0.0
        %472 = vmatpush1.msra.mxu0 0.0
        %473 = vmatprep.subr.mxu0 0.0
        %474 = vmatpush1.msra.mxu0 0.0
        %475 = vmatprep.subr.mxu0 0.0
        %476 = vmatpush1.msra.mxu0 0.0
        %477 = vmatprep.subr.mxu0 0.0
        %478 = vmatpush1.msra.mxu0 0.0
        %479 = vmatprep.subr.mxu0 0.0
        %480 = vmatpush1.msra.mxu0 0.0
        %481 = vmatprep.subr.mxu0 0.0
        %482 = vmatpush1.msra.mxu0 0.0
        %483 = vmatprep.subr.mxu0 0.0
        %484 = vmatpush1.msra.mxu0 0.0
        %485 = vmatprep.subr.mxu0 0.0
        %486 = vmatpush1.msra.mxu0 0.0
        %487 = vmatprep.subr.mxu0 0.0
        %488 = vmatpush1.msra.mxu0 0.0
        %489 = vmatprep.subr.mxu0 0.0
        %490 = vmatpush1.msra.mxu0 0.0
        %491 = vmatprep.subr.mxu0 0.0
        %492 = vmatpush1.msra.mxu0 0.0
        %493 = vmatprep.subr.mxu0 0.0
        %494 = vmatpush1.msra.mxu0 0.0
        %495 = vmatprep.subr.mxu0 0.0
        %496 = vmatpush1.msra.mxu0 0.0
        %497 = vmatprep.subr.mxu0 0.0
        %498 = vmatpush1.msra.mxu0 0.0
        %499 = vmatprep.subr.mxu0 0.0
        %500 = vmatpush1.msra.mxu0 0.0
        %501 = vmatprep.subr.mxu0 0.0
        %502 = vmatpush1.msra.mxu0 0.0
        %503 = vmatprep.mubr.f32.mxu0 0.0
        %504 = vmatmul.mubr.f32.gmra.mrb[0].mxu0 %v434
        %v505 = vpop.f32.mrb[0].mxu0
        %v506 = vadd.f32 0.0, %v505
        %v507 = vpop.f32.mrb[0].mxu0
        %v508 = vadd.f32 0.0, %v507
        %509 = vmatprep.mubr.f32.mxu0 0.0
        %510 = vmatmul.mubr.f32.gmra.mrb[0].mxu0 %v437
        %v511 = vpop.f32.mrb[0].mxu0
        %v512 = vadd.f32 0.0, %v511
        %v513 = vpop.f32.mrb[0].mxu0
        %v514 = vadd.f32 0.0, %v513
        %515 = vdwg.mxu0
        %v516 = vmul.f32 %v506, %v506
        %v517 = vmul.f32 %v508, %v508
        %v518 = vmul.f32 %v512, %v512
        %v519 = vmul.f32 %v514, %v514
        %520 = vmatprep.subr.mxu0 0.0
        %521 = vmatpush1.msra.mxu0 %v256
        %522 = vmatprep.subr.mxu0 0.0
        %523 = vmatpush1.msra.mxu0 %v257
        %524 = vmatprep.subr.mxu0 0.0
        %525 = vmatpush1.msra.mxu0 %v258
        %526 = vmatprep.subr.mxu0 0.0
        %527 = vmatpush1.msra.mxu0 %v259
        %528 = vmatprep.subr.mxu0 0.0
        %529 = vmatpush1.msra.mxu0 %v260
        %530 = vmatprep.subr.mxu0 0.0
        %531 = vmatpush1.msra.mxu0 %v261
        %532 = vmatprep.subr.mxu0 0.0
        %533 = vmatpush1.msra.mxu0 %v262
        %534 = vmatprep.subr.mxu0 0.0
        %535 = vmatpush1.msra.mxu0 %v263
        %536 = vmatprep.subr.mxu0 0.0
        %537 = vmatpush1.msra.mxu0 %v264
        %538 = vmatprep.subr.mxu0 0.0
        %539 = vmatpush1.msra.mxu0 %v265
        %540 = vmatprep.subr.mxu0 0.0
        %541 = vmatpush1.msra.mxu0 %v266
        %542 = vmatprep.subr.mxu0 0.0
        %543 = vmatpush1.msra.mxu0 %v267
        %544 = vmatprep.subr.mxu0 0.0
        %545 = vmatpush1.msra.mxu0 %v268
        %546 = vmatprep.subr.mxu0 0.0
        %547 = vmatpush1.msra.mxu0 %v269
        %548 = vmatprep.subr.mxu0 0.0
        %549 = vmatpush1.msra.mxu0 %v270
        %550 = vmatprep.subr.mxu0 0.0
        %551 = vmatpush1.msra.mxu0 %v271
        %552 = vmatprep.subr.mxu0 0.0
        %553 = vmatpush1.msra.mxu0 %v272
        %554 = vmatprep.subr.mxu0 0.0
        %555 = vmatpush1.msra.mxu0 %v273
        %556 = vmatprep.subr.mxu0 0.0
        %557 = vmatpush1.msra.mxu0 %v274
        %558 = vmatprep.subr.mxu0 0.0
        %559 = vmatpush1.msra.mxu0 %v275
        %560 = vmatprep.subr.mxu0 0.0
        %561 = vmatpush1.msra.mxu0 %v276
        %562 = vmatprep.subr.mxu0 0.0
        %563 = vmatpush1.msra.mxu0 %v277
        %564 = vmatprep.subr.mxu0 0.0
        %565 = vmatpush1.msra.mxu0 %v278
        %566 = vmatprep.subr.mxu0 0.0
        %567 = vmatpush1.msra.mxu0 %v279
        %568 = vmatprep.subr.mxu0 0.0
        %569 = vmatpush1.msra.mxu0 %v280
        %570 = vmatprep.subr.mxu0 0.0
        %571 = vmatpush1.msra.mxu0 %v281
        %572 = vmatprep.subr.mxu0 0.0
        %573 = vmatpush1.msra.mxu0 %v282
        %574 = vmatprep.subr.mxu0 0.0
        %575 = vmatpush1.msra.mxu0 %v283
        %576 = vmatprep.subr.mxu0 0.0
        %577 = vmatpush1.msra.mxu0 %v284
        %578 = vmatprep.subr.mxu0 0.0
        %579 = vmatpush1.msra.mxu0 %v285
        %580 = vmatprep.subr.mxu0 0.0
        %581 = vmatpush1.msra.mxu0 %v286
        %582 = vmatprep.subr.mxu0 0.0
        %583 = vmatpush1.msra.mxu0 %v287
        %584 = vmatprep.mubr.f32.mxu0 %v508
        %585 = vmatmul.mubr.f32.gmra.mrb[0].mxu0 %v506
        %v586 = vpop.f32.mrb[0].mxu0
        %v587 = vadd.f32 0.0, %v586
        %v588 = vpop.f32.mrb[0].mxu0
        %589 = vmatprep.mubr.f32.mxu0 %v514
        %590 = vmatmul.mubr.f32.gmra.mrb[0].mxu0 %v512
        %v591 = vpop.f32.mrb[0].mxu0
        %v592 = vadd.f32 0.0, %v591
        %v593 = vpop.f32.mrb[0].mxu0
        %594 = vmatprep.mubr.f32.mxu0 %v517
        %595 = vmatmul.mubr.f32.gmra.mrb[0].mxu0 %v516
        %v596 = vpop.f32.mrb[0].mxu0
        %v597 = vadd.f32 0.0, %v596
        %v598 = vpop.f32.mrb[0].mxu0
        %599 = vmatprep.mubr.f32.mxu0 %v519
        %600 = vmatmul.mubr.f32.gmra.mrb[0].mxu0 %v518
        %v601 = vpop.f32.mrb[0].mxu0
        %v602 = vadd.f32 0.0, %v601
        %v603 = vpop.f32.mrb[0].mxu0
        %604 = vdwg.mxu0
        %v605 = vmul.f32 %v587, %v587
        %v606 = vmul.f32 %v592, %v592
        %v607 = vsub.f32 %v597, %v605
        %v608 = vsub.f32 %v602, %v606
        %v609 = vmax.f32 %v607, 0.0
        %v610 = vmax.f32 %v608, 0.0
        %v611 = vadd.f32 %v609, 1e-05
        %v612 = vadd.f32 %v610, 1e-05
        %v613 = vrsqrt.pop %v611
        %v614 = vrsqrt.pop %v612
        %v615 = vsub.f32 0.0, %v587
        %v616 = vsub.f32 0.0, %v592
        %v617 = vmul.f32 %v615, %v613
        %v618 = vmul.f32 %v616, %v614
        %vm619 = vcmask 64512
        %v621 = vsel %vm619, %v613, 0
        %v624 = vsel %vm619, %v614, 0
        %v627 = vsel %vm619, %v617, 0
        %v630 = vsel %vm619, %v618, 0
        %632 = vmatprep.subr.mxu0 %v289
        %633 = vmatpush1.msra.mxu0 %v288
        %634 = vmatprep.subr.mxu0 0.0
        %635 = vmatpush1.msra.mxu0 0.0
        %636 = vmatprep.subr.mxu0 0.0
        %637 = vmatpush1.msra.mxu0 0.0
        %638 = vmatprep.subr.mxu0 0.0
        %639 = vmatpush1.msra.mxu0 0.0
        %640 = vmatprep.subr.mxu0 0.0
        %641 = vmatpush1.msra.mxu0 0.0
        %642 = vmatprep.subr.mxu0 0.0
        %643 = vmatpush1.msra.mxu0 0.0
        %644 = vmatprep.subr.mxu0 0.0
        %645 = vmatpush1.msra.mxu0 0.0
        %646 = vmatprep.subr.mxu0 0.0
        %647 = vmatpush1.msra.mxu0 0.0
        %648 = vmatprep.subr.mxu0 0.0
        %649 = vmatpush1.msra.mxu0 0.0
        %650 = vmatprep.subr.mxu0 0.0
        %651 = vmatpush1.msra.mxu0 0.0
        %652 = vmatprep.subr.mxu0 0.0
        %653 = vmatpush1.msra.mxu0 0.0
        %654 = vmatprep.subr.mxu0 0.0
        %655 = vmatpush1.msra.mxu0 0.0
        %656 = vmatprep.subr.mxu0 0.0
        %657 = vmatpush1.msra.mxu0 0.0
        %658 = vmatprep.subr.mxu0 0.0
        %659 = vmatpush1.msra.mxu0 0.0
        %660 = vmatprep.subr.mxu0 0.0
        %661 = vmatpush1.msra.mxu0 0.0
        %662 = vmatprep.subr.mxu0 0.0
        %663 = vmatpush1.msra.mxu0 0.0
        %664 = vmatprep.subr.mxu0 0.0
        %665 = vmatpush1.msra.mxu0 0.0
        %666 = vmatprep.subr.mxu0 0.0
        %667 = vmatpush1.msra.mxu0 0.0
        %668 = vmatprep.subr.mxu0 0.0
        %669 = vmatpush1.msra.mxu0 0.0
        %670 = vmatprep.subr.mxu0 0.0
        %671 = vmatpush1.msra.mxu0 0.0
        %672 = vmatprep.subr.mxu0 0.0
        %673 = vmatpush1.msra.mxu0 0.0
        %674 = vmatprep.subr.mxu0 0.0
        %675 = vmatpush1.msra.mxu0 0.0
        %676 = vmatprep.subr.mxu0 0.0
        %677 = vmatpush1.msra.mxu0 0.0
        %678 = vmatprep.subr.mxu0 0.0
        %679 = vmatpush1.msra.mxu0 0.0
        %680 = vmatprep.subr.mxu0 0.0
        %681 = vmatpush1.msra.mxu0 0.0
        %682 = vmatprep.subr.mxu0 0.0
        %683 = vmatpush1.msra.mxu0 0.0
        %684 = vmatprep.subr.mxu0 0.0
        %685 = vmatpush1.msra.mxu0 0.0
        %686 = vmatprep.subr.mxu0 0.0
        %687 = vmatpush1.msra.mxu0 0.0
        %688 = vmatprep.subr.mxu0 0.0
        %689 = vmatpush1.msra.mxu0 0.0
        %690 = vmatprep.subr.mxu0 0.0
        %691 = vmatpush1.msra.mxu0 0.0
        %692 = vmatprep.subr.mxu0 0.0
        %693 = vmatpush1.msra.mxu0 0.0
        %694 = vmatprep.subr.mxu0 0.0
        %695 = vmatpush1.msra.mxu0 0.0
        %696 = vmatprep.mubr.f32.mxu0 0.0
        %697 = vmatmul.mubr.f32.gmra.mrb[0].mxu0 %v621
        %v698 = vpop.f32.mrb[0].mxu0
        %v699 = vadd.f32 0.0, %v698
        %v700 = vpop.f32.mrb[0].mxu0
        %v701 = vadd.f32 0.0, %v700
        %702 = vmatprep.mubr.f32.mxu0 0.0
        %703 = vmatmul.mubr.f32.gmra.mrb[0].mxu0 %v624
        %v704 = vpop.f32.mrb[0].mxu0
        %v705 = vadd.f32 0.0, %v704
        %v706 = vpop.f32.mrb[0].mxu0
        %v707 = vadd.f32 0.0, %v706
        %708 = vmatprep.mubr.f32.mxu0 0.0
        %709 = vmatmul.mubr.f32.gmra.mrb[0].mxu0 %v627
        %v710 = vpop.f32.mrb[0].mxu0
        %v711 = vadd.f32 0.0, %v710
        %v712 = vpop.f32.mrb[0].mxu0
        %v713 = vadd.f32 0.0, %v712
        %714 = vmatprep.mubr.f32.mxu0 0.0
        %715 = vmatmul.mubr.f32.gmra.mrb[0].mxu0 %v630
        %v716 = vpop.f32.mrb[0].mxu0
        %v717 = vadd.f32 0.0, %v716
        %v718 = vpop.f32.mrb[0].mxu0
        %v719 = vadd.f32 0.0, %v718
        %720 = vdwg.mxu0
        %v721 = vmul.f32 %v506, %v699
        %v722 = vmul.f32 %v508, %v701
        %v723 = vmul.f32 %v512, %v705
        %v724 = vmul.f32 %v514, %v707
        %v725 = vadd.f32 %v721, %v711
        %v726 = vadd.f32 %v722, %v713
        %v727 = vadd.f32 %v723, %v717
        %v728 = vadd.f32 %v724, %v719
        %v729 = vmax.f32 %v725, 0.0
        %v730 = vmax.f32 %v726, 0.0
        %731 = vrot.lane.b32.xlu0 %v729, 17
        %v732 = vpop.permute.xlu0 %731
        %733 = vrot.lane.b32.xlu0 %v730, 17
        %v734 = vpop.permute.xlu0 %733
        %v735 = vsel %vm300, %v732, %v734
        %v736 = vsel %vm300, %v734, %v732
        %v737 = vmul.f32 %v736, %v306
        %v738 = vmul.f32 %v735, %v310
        %739 = vrot.lane.b32.xlu0 %v729, 16
        %v740 = vpop.permute.xlu0 %739
        %741 = vrot.lane.b32.xlu0 %v730, 16
        %v742 = vpop.permute.xlu0 %741
        %v743 = vsel %vm317, %v740, %v742
        %v744 = vsel %vm317, %v742, %v740
        %v745 = vmul.f32 %v744, %v323
        %v746 = vmul.f32 %v743, %v327
        %747 = vrot.lane.b32.xlu0 %v729, 15
        %v748 = vpop.permute.xlu0 %747
        %749 = vrot.lane.b32.xlu0 %v730, 15
        %v750 = vpop.permute.xlu0 %749
        %v751 = vsel %vm334, %v748, %v750
        %v752 = vsel %vm334, %v750, %v748
        %v753 = vmul.f32 %v752, %v340
        %v754 = vmul.f32 %v751, %v344
        %755 = vrot.lane.b32.xlu0 %v729, 1
        %v756 = vpop.permute.xlu0 %755
        %757 = vrot.lane.b32.xlu0 %v730, 1
        %v758 = vpop.permute.xlu0 %757
        %v759 = vsel %vm351, %v756, %v758
        %v760 = vsel %vm351, %v758, %v756
        %v761 = vmul.f32 %v760, %v357
        %v762 = vmul.f32 %v759, %v361
        %763 = vrot.lane.b32.xlu0 %v729, 127
        %v764 = vpop.permute.xlu0 %763
        %765 = vrot.lane.b32.xlu0 %v730, 127
        %v766 = vpop.permute.xlu0 %765
        %v767 = vsel %vm368, %v764, %v766
        %v768 = vsel %vm368, %v766, %v764
        %v769 = vmul.f32 %v767, %v374
        %v770 = vmul.f32 %v768, %v378
        %771 = vrot.lane.b32.xlu0 %v729, 113
        %v772 = vpop.permute.xlu0 %771
        %773 = vrot.lane.b32.xlu0 %v730, 113
        %v774 = vpop.permute.xlu0 %773
        %v775 = vsel %vm385, %v772, %v774
        %v776 = vsel %vm385, %v774, %v772
        %v777 = vmul.f32 %v775, %v391
        %v778 = vmul.f32 %v776, %v395
        %779 = vrot.lane.b32.xlu0 %v729, 112
        %v780 = vpop.permute.xlu0 %779
        %781 = vrot.lane.b32.xlu0 %v730, 112
        %v782 = vpop.permute.xlu0 %781
        %v783 = vsel %vm402, %v780, %v782
        %v784 = vsel %vm402, %v782, %v780
        %v785 = vmul.f32 %v783, %v408
        %v786 = vmul.f32 %v784, %v412
        %787 = vrot.lane.b32.xlu0 %v729, 111
        %v788 = vpop.permute.xlu0 %787
        %789 = vrot.lane.b32.xlu0 %v730, 111
        %v790 = vpop.permute.xlu0 %789
        %v791 = vsel %vm419, %v788, %v790
        %v792 = vsel %vm419, %v790, %v788
        %v793 = vmul.f32 %v791, %v425
        %v794 = vmul.f32 %v792, %v429
        %v796 = vsel %vm432, %v255, 0
        %798 = vmatprep.subr.mxu0 %v738
        %799 = vmatpush1.msra.mxu0 %v737
        %800 = vmatprep.subr.mxu0 %v746
        %801 = vmatpush1.msra.mxu0 %v745
        %802 = vmatprep.subr.mxu0 %v754
        %803 = vmatpush1.msra.mxu0 %v753
        %804 = vmatprep.subr.mxu0 %v762
        %805 = vmatpush1.msra.mxu0 %v761
        %806 = vmatprep.subr.mxu0 %v730
        %807 = vmatpush1.msra.mxu0 %v729
        %808 = vmatprep.subr.mxu0 %v770
        %809 = vmatpush1.msra.mxu0 %v769
        %810 = vmatprep.subr.mxu0 %v778
        %811 = vmatpush1.msra.mxu0 %v777
        %812 = vmatprep.subr.mxu0 %v786
        %813 = vmatpush1.msra.mxu0 %v785
        %814 = vmatprep.subr.mxu0 %v794
        %815 = vmatpush1.msra.mxu0 %v793
        %816 = vmatprep.subr.mxu0 0.0
        %817 = vmatpush1.msra.mxu0 0.0
        %818 = vmatprep.subr.mxu0 0.0
        %819 = vmatpush1.msra.mxu0 0.0
        %820 = vmatprep.subr.mxu0 0.0
        %821 = vmatpush1.msra.mxu0 0.0
        %822 = vmatprep.subr.mxu0 0.0
        %823 = vmatpush1.msra.mxu0 0.0
        %824 = vmatprep.subr.mxu0 0.0
        %825 = vmatpush1.msra.mxu0 0.0
        %826 = vmatprep.subr.mxu0 0.0
        %827 = vmatpush1.msra.mxu0 0.0
        %828 = vmatprep.subr.mxu0 0.0
        %829 = vmatpush1.msra.mxu0 0.0
        %830 = vmatprep.subr.mxu0 0.0
        %831 = vmatpush1.msra.mxu0 0.0
        %832 = vmatprep.subr.mxu0 0.0
        %833 = vmatpush1.msra.mxu0 0.0
        %834 = vmatprep.subr.mxu0 0.0
        %835 = vmatpush1.msra.mxu0 0.0
        %836 = vmatprep.subr.mxu0 0.0
        %837 = vmatpush1.msra.mxu0 0.0
        %838 = vmatprep.subr.mxu0 0.0
        %839 = vmatpush1.msra.mxu0 0.0
        %840 = vmatprep.subr.mxu0 0.0
        %841 = vmatpush1.msra.mxu0 0.0
        %842 = vmatprep.subr.mxu0 0.0
        %843 = vmatpush1.msra.mxu0 0.0
        %844 = vmatprep.subr.mxu0 0.0
        %845 = vmatpush1.msra.mxu0 0.0
        %846 = vmatprep.subr.mxu0 0.0
        %847 = vmatpush1.msra.mxu0 0.0
        %848 = vmatprep.subr.mxu0 0.0
        %849 = vmatpush1.msra.mxu0 0.0
        %850 = vmatprep.subr.mxu0 0.0
        %851 = vmatpush1.msra.mxu0 0.0
        %852 = vmatprep.subr.mxu0 0.0
        %853 = vmatpush1.msra.mxu0 0.0
        %854 = vmatprep.subr.mxu0 0.0
        %855 = vmatpush1.msra.mxu0 0.0
        %856 = vmatprep.subr.mxu0 0.0
        %857 = vmatpush1.msra.mxu0 0.0
        %858 = vmatprep.subr.mxu0 0.0
        %859 = vmatpush1.msra.mxu0 0.0
        %860 = vmatprep.subr.mxu0 0.0
        %861 = vmatpush1.msra.mxu0 0.0
        %862 = vmatprep.mubr.f32.mxu0 0.0
        %863 = vmatmul.mubr.f32.gmra.mrb[0].mxu0 %v796
        %v864 = vpop.f32.mrb[0].mxu0
        %v865 = vadd.f32 0.0, %v864
        %v866 = vpop.f32.mrb[0].mxu0
        %v867 = vadd.f32 0.0, %v866
        %868 = vdwg.mxu0
        %v869 = vmul.f32 %v865, %v865
        %v870 = vmul.f32 %v867, %v867
        %871 = vmatprep.subr.mxu0 0.0
        %872 = vmatpush1.msra.mxu0 %v256
        %873 = vmatprep.subr.mxu0 0.0
        %874 = vmatpush1.msra.mxu0 %v257
        %875 = vmatprep.subr.mxu0 0.0
        %876 = vmatpush1.msra.mxu0 %v258
        %877 = vmatprep.subr.mxu0 0.0
        %878 = vmatpush1.msra.mxu0 %v259
        %879 = vmatprep.subr.mxu0 0.0
        %880 = vmatpush1.msra.mxu0 %v260
        %881 = vmatprep.subr.mxu0 0.0
        %882 = vmatpush1.msra.mxu0 %v261
        %883 = vmatprep.subr.mxu0 0.0
        %884 = vmatpush1.msra.mxu0 %v262
        %885 = vmatprep.subr.mxu0 0.0
        %886 = vmatpush1.msra.mxu0 %v263
        %887 = vmatprep.subr.mxu0 0.0
        %888 = vmatpush1.msra.mxu0 %v264
        %889 = vmatprep.subr.mxu0 0.0
        %890 = vmatpush1.msra.mxu0 %v265
        %891 = vmatprep.subr.mxu0 0.0
        %892 = vmatpush1.msra.mxu0 %v266
        %893 = vmatprep.subr.mxu0 0.0
        %894 = vmatpush1.msra.mxu0 %v267
        %895 = vmatprep.subr.mxu0 0.0
        %896 = vmatpush1.msra.mxu0 %v268
        %897 = vmatprep.subr.mxu0 0.0
        %898 = vmatpush1.msra.mxu0 %v269
        %899 = vmatprep.subr.mxu0 0.0
        %900 = vmatpush1.msra.mxu0 %v270
        %901 = vmatprep.subr.mxu0 0.0
        %902 = vmatpush1.msra.mxu0 %v271
        %903 = vmatprep.subr.mxu0 0.0
        %904 = vmatpush1.msra.mxu0 %v272
        %905 = vmatprep.subr.mxu0 0.0
        %906 = vmatpush1.msra.mxu0 %v273
        %907 = vmatprep.subr.mxu0 0.0
        %908 = vmatpush1.msra.mxu0 %v274
        %909 = vmatprep.subr.mxu0 0.0
        %910 = vmatpush1.msra.mxu0 %v275
        %911 = vmatprep.subr.mxu0 0.0
        %912 = vmatpush1.msra.mxu0 %v276
        %913 = vmatprep.subr.mxu0 0.0
        %914 = vmatpush1.msra.mxu0 %v277
        %915 = vmatprep.subr.mxu0 0.0
        %916 = vmatpush1.msra.mxu0 %v278
        %917 = vmatprep.subr.mxu0 0.0
        %918 = vmatpush1.msra.mxu0 %v279
        %919 = vmatprep.subr.mxu0 0.0
        %920 = vmatpush1.msra.mxu0 %v280
        %921 = vmatprep.subr.mxu0 0.0
        %922 = vmatpush1.msra.mxu0 %v281
        %923 = vmatprep.subr.mxu0 0.0
        %924 = vmatpush1.msra.mxu0 %v282
        %925 = vmatprep.subr.mxu0 0.0
        %926 = vmatpush1.msra.mxu0 %v283
        %927 = vmatprep.subr.mxu0 0.0
        %928 = vmatpush1.msra.mxu0 %v284
        %929 = vmatprep.subr.mxu0 0.0
        %930 = vmatpush1.msra.mxu0 %v285
        %931 = vmatprep.subr.mxu0 0.0
        %932 = vmatpush1.msra.mxu0 %v286
        %933 = vmatprep.subr.mxu0 0.0
        %934 = vmatpush1.msra.mxu0 %v287
        %935 = vmatprep.mubr.f32.mxu0 %v867
        %936 = vmatmul.mubr.f32.gmra.mrb[0].mxu0 %v865
        %v937 = vpop.f32.mrb[0].mxu0
        %v938 = vadd.f32 0.0, %v937
        %v939 = vpop.f32.mrb[0].mxu0
        %940 = vmatprep.mubr.f32.mxu0 %v870
        %941 = vmatmul.mubr.f32.gmra.mrb[0].mxu0 %v869
        %v942 = vpop.f32.mrb[0].mxu0
        %v943 = vadd.f32 0.0, %v942
        %v944 = vpop.f32.mrb[0].mxu0
        %945 = vdwg.mxu0
        %v946 = vmul.f32 %v938, %v938
        %v947 = vsub.f32 %v943, %v946
        %v948 = vmax.f32 %v947, 0.0
        %v949 = vadd.f32 %v948, 1e-05
        %v950 = vrsqrt.pop %v949
        %v951 = vsub.f32 0.0, %v938
        %v952 = vmul.f32 %v951, %v950
        %v954 = vsel %vm619, %v950, 0
        %v957 = vsel %vm619, %v952, 0
        %959 = vmatprep.subr.mxu0 %v289
        %960 = vmatpush1.msra.mxu0 %v288
        %961 = vmatprep.subr.mxu0 0.0
        %962 = vmatpush1.msra.mxu0 0.0
        %963 = vmatprep.subr.mxu0 0.0
        %964 = vmatpush1.msra.mxu0 0.0
        %965 = vmatprep.subr.mxu0 0.0
        %966 = vmatpush1.msra.mxu0 0.0
        %967 = vmatprep.subr.mxu0 0.0
        %968 = vmatpush1.msra.mxu0 0.0
        %969 = vmatprep.subr.mxu0 0.0
        %970 = vmatpush1.msra.mxu0 0.0
        %971 = vmatprep.subr.mxu0 0.0
        %972 = vmatpush1.msra.mxu0 0.0
        %973 = vmatprep.subr.mxu0 0.0
        %974 = vmatpush1.msra.mxu0 0.0
        %975 = vmatprep.subr.mxu0 0.0
        %976 = vmatpush1.msra.mxu0 0.0
        %977 = vmatprep.subr.mxu0 0.0
        %978 = vmatpush1.msra.mxu0 0.0
        %979 = vmatprep.subr.mxu0 0.0
        %980 = vmatpush1.msra.mxu0 0.0
        %981 = vmatprep.subr.mxu0 0.0
        %982 = vmatpush1.msra.mxu0 0.0
        %983 = vmatprep.subr.mxu0 0.0
        %984 = vmatpush1.msra.mxu0 0.0
        %985 = vmatprep.subr.mxu0 0.0
        %986 = vmatpush1.msra.mxu0 0.0
        %987 = vmatprep.subr.mxu0 0.0
        %988 = vmatpush1.msra.mxu0 0.0
        %989 = vmatprep.subr.mxu0 0.0
        %990 = vmatpush1.msra.mxu0 0.0
        %991 = vmatprep.subr.mxu0 0.0
        %992 = vmatpush1.msra.mxu0 0.0
        %993 = vmatprep.subr.mxu0 0.0
        %994 = vmatpush1.msra.mxu0 0.0
        %995 = vmatprep.subr.mxu0 0.0
        %996 = vmatpush1.msra.mxu0 0.0
        %997 = vmatprep.subr.mxu0 0.0
        %998 = vmatpush1.msra.mxu0 0.0
        %999 = vmatprep.subr.mxu0 0.0
        %1000 = vmatpush1.msra.mxu0 0.0
        %1001 = vmatprep.subr.mxu0 0.0
        %1002 = vmatpush1.msra.mxu0 0.0
        %1003 = vmatprep.subr.mxu0 0.0
        %1004 = vmatpush1.msra.mxu0 0.0
        %1005 = vmatprep.subr.mxu0 0.0
        %1006 = vmatpush1.msra.mxu0 0.0
        %1007 = vmatprep.subr.mxu0 0.0
        %1008 = vmatpush1.msra.mxu0 0.0
        %1009 = vmatprep.subr.mxu0 0.0
        %1010 = vmatpush1.msra.mxu0 0.0
        %1011 = vmatprep.subr.mxu0 0.0
        %1012 = vmatpush1.msra.mxu0 0.0
        %1013 = vmatprep.subr.mxu0 0.0
        %1014 = vmatpush1.msra.mxu0 0.0
        %1015 = vmatprep.subr.mxu0 0.0
        %1016 = vmatpush1.msra.mxu0 0.0
        %1017 = vmatprep.subr.mxu0 0.0
        %1018 = vmatpush1.msra.mxu0 0.0
        %1019 = vmatprep.subr.mxu0 0.0
        %1020 = vmatpush1.msra.mxu0 0.0
        %1021 = vmatprep.subr.mxu0 0.0
        %1022 = vmatpush1.msra.mxu0 0.0
        %1023 = vmatprep.mubr.f32.mxu0 0.0
        %1024 = vmatmul.mubr.f32.gmra.mrb[0].mxu0 %v954
        %v1025 = vpop.f32.mrb[0].mxu0
        %v1026 = vadd.f32 0.0, %v1025
        %v1027 = vpop.f32.mrb[0].mxu0
        %v1028 = vadd.f32 0.0, %v1027
        %1029 = vmatprep.mubr.f32.mxu0 0.0
        %1030 = vmatmul.mubr.f32.gmra.mrb[0].mxu0 %v957
        %v1031 = vpop.f32.mrb[0].mxu0
        %v1032 = vadd.f32 0.0, %v1031
        %v1033 = vpop.f32.mrb[0].mxu0
        %v1034 = vadd.f32 0.0, %v1033
        %1035 = vdwg.mxu0
        %v1036 = vmul.f32 %v865, %v1026
        %v1037 = vmul.f32 %v867, %v1028
        %v1038 = vadd.f32 %v1036, %v1032
        %v1039 = vadd.f32 %v1037, %v1034
        %v1040 = vadd.f32 %v1038, %v727
        %v1041 = vadd.f32 %v1039, %v728
        %v1042 = vmax.f32 %v1040, 0.0
        %v1043 = vmax.f32 %v1041, 0.0
        %1044 = vst [vmem:[%s245] sm:$0xff] %v1042
        %1045 = vst [vmem:[%s245 + $0x8] sm:$0xff] %v1043
        %s1046 = sand.u32 %s159, 1
        %s1047 = scalar_lea.sflag [#allocation3], %s1046
        %s1048 = sand.u32 %s159, 1
        %s1049 = smul.addr %s1048, 16
        %s1050 = scalar_lea.vmem [#allocation2], %s1049
        // Predicated region
        $region45: #{tpu_custom_call.1} parent=43 // pred_check
          %p1051 = pneg %p169
        $region46: #{tpu_custom_call.1} parent=43 // pred_check_branch
          %1053 = sbr.rel (%p1051) target = $region48
        $region47: #{tpu_custom_call.1} parent=43 // pred_region
          %s1054 = smul.u32 2, %s20
          %s1056 = ssub.s32 256, 256
          %1057 = vsyncadd %s1047, %s1056
          %s1058 = smul.addr %s1054, 128
          %s1059 = scalar_lea.hbm %s6, %s1058
          %s1061 = sshll.u32 %s1050, 4
          %s1062 = int_to_ptr.vmem [resolvable:$true] %s1061
          %1064 = dma.vmem_to_hbm [thread:$0]  %s1062, 256, %s1059, %s1047
        $region48: #{tpu_custom_call.1} parent=43 // pred_fallthru
          _
      $region44: #{tpu_custom_call.1} parent=5 // pred_fallthru
        _
      %p1065 = scmp.le.s32.totalorder 2, %s15
      // Predicated region
      $region49: #{tpu_custom_call.1} parent=5 // pred_check
        %p1066 = pneg %p1065
      $region50: #{tpu_custom_call.1} parent=5 // pred_check_branch
        %1068 = sbr.rel (%p1066) target = $region52
      $region51: #{tpu_custom_call.1} parent=5 // pred_region
        %s1069 = ssub.s32 %s15, 2
        // Predicated region
        $region53: #{tpu_custom_call.1} parent=51 // pred_check
          %p1070 = pneg %p175
        $region54: #{tpu_custom_call.1} parent=51 // pred_check_branch
          %1072 = sbr.rel (%p1070) target = $region56
        $region55: #{tpu_custom_call.1} parent=51 // pred_region
          %s1073 = sand.u32 %s160, 1
          %s1074 = scalar_lea.sflag [#allocation3], %s1073
          %s1075 = sand.u32 %s160, 1
          %s1076 = smul.addr %s1075, 16
          %s1077 = scalar_lea.vmem [#allocation2], %s1076
          %1078 = dma.done %s1074, 256
        $region56: #{tpu_custom_call.1} parent=51 // pred_fallthru
          _
      $region52: #{tpu_custom_call.1} parent=5 // pred_fallthru
        _
    $region6: #{tpu_custom_call.1} parent=1 // loop_footer
      %s19 = sadd.s32 1, %s15
    $region7: #{tpu_custom_call.1} parent=1 // loop_footer_branch
      %14 = sbr.rel target = $region3
    $region8: #{tpu_custom_call.1} parent=1 // loop_exit
      _
    %1079 = vsyncpa [#allocation3], 1
    %s1080 = scalar_lea.sflag [#allocation3], 1
    %1081 = vsyncpa %s1080, 1

</llo_original>
